<compile_context>
chip_gen: v5e
topology: v5e:2x2
jax: 0.10.0
libtpu: 0.0.40
codegen_flags: <defaults>
</compile_context>

<pallas_src>
import functools

import jax
import jax.numpy as jnp
from jax import lax
from jax.experimental import pallas as pl
from jax.experimental.pallas import tpu as pltpu


def _round_up(x, m):
    return ((x + m - 1) // m) * m


def _vmem_budget_and_limit():
    """Generation-aware VMEM working-set budget and scoped-VMEM limit."""
    cap = 64 * 1024 * 1024  # conservative fallback = v7x per-TC physical VMEM
    try:
        cap = int(pltpu.get_tpu_info().vmem_capacity_bytes)
    except Exception:
        pass
    budget = min(cap // 3, 48 * 1024 * 1024)      # v7x ~21 MiB, v5e/v6e ~42-48 MiB
    limit = min((cap * 3) // 4, 100 * 1024 * 1024)  # v7x 48 MiB, v5e/v6e 96 MiB
    return budget, limit


def _pick_tile_p(hw, c, itemsize, tile_p_max, vmem_budget):
    """Largest pixel tile (multiple of 128) whose per-step working set fits the budget."""
    def step_bytes(tp):
        logits = 2 * c * tp * itemsize   # double-buffered logits blocks (original dtype)
        target = 2 * tp * 4              # double-buffered target blocks
        accs = 2 * tp * 4                # (1, TP) loss / weight accumulators
        temps = 4 * c * tp * 4           # f32 working-set headroom (x, z, exp(z), sel)
        return logits + target + accs + temps

    tp = tile_p_max
    while tp > 128 and step_bytes(tp) > vmem_budget:
        tp //= 2
    tp = min(tp, _round_up(hw, 128))     # never wider than the (128-rounded) pixel count
    return max(128, tp)


def _ce_kernel(*refs, ignore, hw, tile_p, has_weights, ragged):
    if has_weights:
        x_ref, t_ref, w_ref, loss_ref, wsum_ref, acc_loss, acc_w = refs
    else:
        x_ref, t_ref, loss_ref, wsum_ref, acc_loss, acc_w = refs
        w_ref = None

    b = pl.program_id(1)                      # batch (reduction) axis

    @pl.when(b == 0)
    def _():
        acc_loss[...] = jnp.zeros_like(acc_loss)
        acc_w[...] = jnp.zeros_like(acc_w)

    x = x_ref[0].astype(jnp.float32)          # (C, TP): classes on sublanes, pixels on lanes
    t = t_ref[0]                              # (1, TP) int32 targets

    valid = t != ignore                       # (1, TP) bool
    if ragged:
        # cdiv grid: mask pixels past the true pixel count.  Only the (1, TP) mask is
        # needed -- OOB garbage is kept out of the results purely via selects below.
        j = pl.program_id(0)
        lane = lax.broadcasted_iota(jnp.int32, (1, tile_p), 1)
        valid = jnp.logical_and(valid, (j * tile_p + lane) < hw)

    # numerically stable log-sum-exp along the class (sublane) axis
    m = jnp.max(x, axis=0, keepdims=True)                        # (1, TP)
    z = x - m                                                    # (C, TP)
    lse = jnp.log(jnp.sum(jnp.exp(z), axis=0, keepdims=True))    # (1, TP)

    # fused gather of the target logit: boolean select + sublane reduce; no (C, TP) logp,
    # no (C, TP) accumulators.
    cls = lax.broadcasted_iota(jnp.int32, x.shape, 0)            # (C, TP)
    sel = jnp.logical_and(cls == t, valid)                       # (C, TP)
    z_t = jnp.sum(jnp.where(sel, z, 0.0), axis=0, keepdims=True)  # (1, TP)

    if has_weights:
        w_t = jnp.sum(jnp.where(sel, w_ref[...], 0.0), axis=0, keepdims=True)  # (1, TP)
        # guard with `valid`: for OOB/ignored columns lse/z_t may be garbage and
        # 0 * NaN would poison the accumulator.
        acc_loss[...] += jnp.where(valid, w_t * (lse - z_t), 0.0)
        acc_w[...] += w_t
    else:
        acc_loss[...] += jnp.where(valid, lse - z_t, 0.0)
        acc_w[...] += valid.astype(jnp.float32)

    # epilogue: single (1, TP) lane reduce per pixel tile, once per batch sweep
    @pl.when(b == pl.num_programs(1) - 1)
    def _():
        loss_ref[0] = jnp.sum(acc_loss[...], axis=1, keepdims=True)   # (1, 1)
        wsum_ref[0] = jnp.sum(acc_w[...], axis=1, keepdims=True)      # (1, 1)


def loss_ce_pallas(logits_nchw, target_nhw, weights=None, ignore=255, *, tile_p_max=8192):
    """Equivalent of loss_ce().forward(input, target, weights, ignore):
    F.cross_entropy(input.float(), target.long(), ignore_index=ignore, weight=weights)."""
    N, C, H, W = logits_nchw.shape
    HW = H * W

    # Pixels-on-lanes layout: NCHW -> (N, C, H*W) is a pure reshape (no transpose copy,
    # no pad, no dtype cast in HBM).  f32 math happens inside the kernel.
    x = logits_nchw.reshape(N, C, HW)
    t = target_nhw.reshape(N, 1, HW).astype(jnp.int32)

    itemsize = jnp.dtype(x.dtype).itemsize
    vmem_budget, vmem_limit = _vmem_budget_and_limit()
    tile_p = _pick_tile_p(HW, C, itemsize, tile_p_max, vmem_budget)
    num_tiles = (HW + tile_p - 1) // tile_p
    if num_tiles == 1 and HW > 128:
        # Keep the parallel (pixel-tile) grid axis >= 2 so both v7x TensorCores get work.
        tile_p = max(128, _round_up((HW + 1) // 2, 128))
        num_tiles = (HW + tile_p - 1) // tile_p
    ragged = (num_tiles * tile_p != HW)
    has_weights = weights is not None

    in_specs = [
        pl.BlockSpec((1, C, tile_p), lambda j, b: (b, 0, j)),   # logits tile (C x pixels)
        pl.BlockSpec((1, 1, tile_p), lambda j, b: (b, 0, j)),   # lane-dense targets
    ]
    inputs = [x, t]
    if has_weights:
        w = jnp.asarray(weights, jnp.float32).reshape(C, 1)
        in_specs.append(pl.BlockSpec((C, 1), lambda j, b: (0, 0)))  # resident class weights
        inputs.append(w)

    kernel = functools.partial(
        _ce_kernel, ignore=ignore, hw=HW, tile_p=tile_p,
        has_weights=has_weights, ragged=ragged)

    bytes_accessed = x.size * itemsize + t.size * 4 + C * 4 + 2 * num_tiles * 4
    cost = pl.CostEstimate(
        flops=8 * N * C * HW,
        transcendentals=N * C * HW + N * HW,
        bytes_accessed=int(bytes_accessed))

    loss_part, w_part = pl.pallas_call(
        kernel,
        out_shape=(
            jax.ShapeDtypeStruct((num_tiles, 1, 1), jnp.float32),
            jax.ShapeDtypeStruct((num_tiles, 1, 1), jnp.float32),
        ),
        grid_spec=pltpu.PrefetchScalarGridSpec(
            num_scalar_prefetch=0,
            grid=(num_tiles, N),          # pixel tiles (parallel) x batch (reduction)
            in_specs=in_specs,
            out_specs=(
                pl.BlockSpec((1, 1, 1), lambda j, b: (j, 0, 0)),
                pl.BlockSpec((1, 1, 1), lambda j, b: (j, 0, 0)),
            ),
            scratch_shapes=[
                pltpu.VMEM((1, tile_p), jnp.float32),   # per-pixel loss accumulator
                pltpu.VMEM((1, tile_p), jnp.float32),   # per-pixel weight / count accumulator
            ],
        ),
        compiler_params=pltpu.CompilerParams(
            dimension_semantics=("parallel", "arbitrary"),
            vmem_limit_bytes=int(vmem_limit)),
        cost_estimate=cost,
    )(*inputs)

    # PyTorch weighted-mean reduction.  (If every pixel is ignore_index this divides by
    # zero and yields NaN, matching F.cross_entropy.)
    return jnp.sum(loss_part) / jnp.sum(w_part)


def _reference_ce(logits_nchw, target_nhw, weights, ignore):
    # pure-JAX reference for a sanity check
    N, C, H, W = logits_nchw.shape
    x = jnp.transpose(logits_nchw, (0, 2, 3, 1)).reshape(-1, C).astype(jnp.float32)
    t = target_nhw.reshape(-1).astype(jnp.int32)
    logp = jax.nn.log_softmax(x, axis=-1)
    valid = (t != ignore)
    t_safe = jnp.where(valid, t, 0)
    logp_t = jnp.take_along_axis(logp, t_safe[:, None], axis=-1)[:, 0]
    w = jnp.ones((C,), jnp.float32) if weights is None else jnp.asarray(weights, jnp.float32)
    w_t = w[t_safe]
    num = jnp.sum(jnp.where(valid, -logp_t * w_t, 0.0))
    den = jnp.sum(jnp.where(valid, w_t, 0.0))
    return num / den


if __name__ == "__main__":
    key = jax.random.PRNGKey(0)
    k1, k2, k3 = jax.random.split(key, 3)

    N, C, H, W = 2, 4, 16, 16
    logits = jax.random.normal(k1, (N, C, H, W), jnp.float32)
    target = jax.random.randint(k2, (N, H, W), 0, C, jnp.int32)
    # sprinkle some ignore_index pixels
    ignore_mask = jax.random.uniform(k3, (N, H, W)) < 0.1
    target = jnp.where(ignore_mask, 255, target)
    weights = jnp.array([1.0, 0.5, 2.0, 1.5], jnp.float32)

    # weighted path
    out = jax.block_until_ready(loss_ce_pallas(logits, target, weights=weights, ignore=255))
    ref = _reference_ce(logits, target, weights, 255)
    assert jnp.allclose(out, ref, rtol=1e-5, atol=1e-5), (out, ref)

    # unweighted path (specialized kernel: no weight gather, valid-count accumulator)
    out2 = jax.block_until_ready(loss_ce_pallas(logits, target, weights=None, ignore=255))
    ref2 = _reference_ce(logits, target, None, 255)
    assert jnp.allclose(out2, ref2, rtol=1e-5, atol=1e-5), (out2, ref2)

    # ragged pixel count (H*W not a multiple of 128): exercises the no-pad, mask-only path
    k4, k5 = jax.random.split(k3)
    logits_r = jax.random.normal(k4, (1, 3, 10, 10), jnp.float32)
    target_r = jax.random.randint(k5, (1, 10, 10), 0, 3, jnp.int32)
    target_r = target_r.at[0, 0, :3].set(255)
    out3 = jax.block_until_ready(loss_ce_pallas(logits_r, target_r, weights=None, ignore=255))
    ref3 = _reference_ce(logits_r, target_r, None, 255)
    assert jnp.allclose(out3, ref3, rtol=1e-5, atol=1e-5), (out3, ref3)

    # ragged + weighted (pins the 0*NaN guard on masked-out columns)
    weights_r = jnp.array([1.0, 2.0, 0.5], jnp.float32)
    out4 = jax.block_until_ready(loss_ce_pallas(logits_r, target_r, weights=weights_r, ignore=255))
    ref4 = _reference_ce(logits_r, target_r, weights_r, 255)
    assert jnp.allclose(out4, ref4, rtol=1e-5, atol=1e-5), (out4, ref4)

    print("KERNEL_OK")
</pallas_src>

<mosaic_0001>
module attributes {stable_mosaic.version = 11 : i64} {
  func.func @_ce_kernel(%arg0: i32, %arg1: i32, %arg2: memref<1x4x128xf32, #tpu.memory_space<vmem>>, %arg3: memref<1x1x128xi32, #tpu.memory_space<vmem>>, %arg4: memref<4x1xf32, #tpu.memory_space<vmem>>, %arg5: memref<1x1x1xf32, #tpu.memory_space<vmem>>, %arg6: memref<1x1x1xf32, #tpu.memory_space<vmem>>, %arg7: memref<1x128xf32, #tpu.memory_space<vmem>>, %arg8: memref<1x128xf32, #tpu.memory_space<vmem>>) attributes {dimension_semantics = [#tpu.dimension_semantics<parallel>, #tpu.dimension_semantics<arbitrary>], iteration_bounds = array<i64: 2, 2>, scalar_prefetch = 0 : i64, scratch_operands = 2 : i64, tpu.core_type = #tpu.core_type<tc>, window_params = [{transform_indices = @transform_0, window_bounds = array<i64: 1, 4, 128>}, {transform_indices = @transform_1, window_bounds = array<i64: 1, 1, 128>}, {pipeline_mode = #tpu.pipeline_mode<synchronous>, transform_indices = @transform_2, window_bounds = array<i64: 4, 1>}, {transform_indices = @transform_3, window_bounds = array<i64: 1, 1, 1>}, {transform_indices = @transform_4, window_bounds = array<i64: 1, 1, 1>}]} {
    %c0_i32 = arith.constant 0 : i32
    %0 = arith.cmpi eq, %arg1, %c0_i32 : i32
    %1 = arith.extui %0 : i1 to i32
    %c0_i32_0 = arith.constant 0 : i32
    %2 = arith.cmpi ne, %1, %c0_i32_0 : i32
    scf.if %2 {
      %cst_23 = arith.constant 0.000000e+00 : f32
      %46 = vector.broadcast %cst_23 : f32 to vector<1x128xf32>
      %c0_24 = arith.constant 0 : index
      %c0_25 = arith.constant 0 : index
      %47 = vector.load %arg7[%c0_24, %c0_25] : memref<1x128xf32, #tpu.memory_space<vmem>>, vector<1x128xf32>
      tpu.vector_store %arg7[%c0_24, %c0_25], %46 {strides = array<i32>} : memref<1x128xf32, #tpu.memory_space<vmem>>, vector<1x128xf32>,
      %cst_26 = arith.constant 0.000000e+00 : f32
      %48 = vector.broadcast %cst_26 : f32 to vector<1x128xf32>
      %c0_27 = arith.constant 0 : index
      %c0_28 = arith.constant 0 : index
      %49 = vector.load %arg8[%c0_27, %c0_28] : memref<1x128xf32, #tpu.memory_space<vmem>>, vector<1x128xf32>
      tpu.vector_store %arg8[%c0_27, %c0_28], %48 {strides = array<i32>} : memref<1x128xf32, #tpu.memory_space<vmem>>, vector<1x128xf32>,
    } else {
    }
    %c0 = arith.constant 0 : index
    %c0_1 = arith.constant 0 : index
    %c0_2 = arith.constant 0 : index
    %3 = vector.load %arg2[%c0, %c0_1, %c0_2] : memref<1x4x128xf32, #tpu.memory_space<vmem>>, vector<1x4x128xf32>
    %4 = vector.shape_cast %3 : vector<1x4x128xf32> to vector<4x128xf32>
    %c0_3 = arith.constant 0 : index
    %c0_4 = arith.constant 0 : index
    %c0_5 = arith.constant 0 : index
    %5 = vector.load %arg3[%c0_3, %c0_4, %c0_5] : memref<1x1x128xi32, #tpu.memory_space<vmem>>, vector<1x1x128xi32>
    %6 = vector.shape_cast %5 : vector<1x1x128xi32> to vector<1x128xi32>
    %c255_i32 = arith.constant 255 : i32
    %7 = vector.broadcast %c255_i32 : i32 to vector<1x128xi32>
    %8 = arith.cmpi ne, %6, %7 : vector<1x128xi32>
    %cst = arith.constant dense<0xFF800000> : vector<128xf32>
    %9 = vector.multi_reduction <maximumf>, %4, %cst [0] : vector<4x128xf32> to vector<128xf32>
    %10 = vector.shape_cast %9 : vector<128xf32> to vector<1x128xf32>
    %11 = vector.broadcast %10 : vector<1x128xf32> to vector<4x128xf32>
    %12 = arith.subf %4, %11 : vector<4x128xf32>
    %13 = math.exp %12 : vector<4x128xf32>
    %cst_6 = arith.constant dense<0.000000e+00> : vector<128xf32>
    %14 = vector.multi_reduction <add>, %13, %cst_6 [0] : vector<4x128xf32> to vector<128xf32>
    %15 = vector.shape_cast %14 : vector<128xf32> to vector<1x128xf32>
    %16 = math.log %15 : vector<1x128xf32>
    %17 = tpu.iota {dimensions = array<i32: 0>} : vector<4x128xi32>
    %18 = vector.broadcast %6 : vector<1x128xi32> to vector<4x128xi32>
    %19 = arith.cmpi eq, %17, %18 : vector<4x128xi32>
    %20 = vector.broadcast %8 : vector<1x128xi1> to vector<4x128xi1>
    %21 = arith.andi %19, %20 : vector<4x128xi1>
    %cst_7 = arith.constant 0.000000e+00 : f32
    %22 = vector.broadcast %cst_7 : f32 to vector<4x128xf32>
    %23 = arith.select %21, %12, %22 : vector<4x128xi1>, vector<4x128xf32>
    %cst_8 = arith.constant dense<0.000000e+00> : vector<128xf32>
    %24 = vector.multi_reduction <add>, %23, %cst_8 [0] : vector<4x128xf32> to vector<128xf32>
    %25 = vector.shape_cast %24 : vector<128xf32> to vector<1x128xf32>
    %c0_9 = arith.constant 0 : index
    %c0_10 = arith.constant 0 : index
    %26 = vector.load %arg4[%c0_9, %c0_10] : memref<4x1xf32, #tpu.memory_space<vmem>>, vector<4x1xf32>
    %cst_11 = arith.constant 0.000000e+00 : f32
    %27 = vector.shape_cast %26 : vector<4x1xf32> to vector<4x1xf32>
    %28 = vector.broadcast %27 : vector<4x1xf32> to vector<4x128xf32>
    %29 = vector.broadcast %cst_11 : f32 to vector<4x128xf32>
    %30 = arith.select %21, %28, %29 : vector<4x128xi1>, vector<4x128xf32>
    %cst_12 = arith.constant dense<0.000000e+00> : vector<128xf32>
    %31 = vector.multi_reduction <add>, %30, %cst_12 [0] : vector<4x128xf32> to vector<128xf32>
    %32 = vector.shape_cast %31 : vector<128xf32> to vector<1x128xf32>
    %c0_13 = arith.constant 0 : index
    %c0_14 = arith.constant 0 : index
    %33 = vector.load %arg7[%c0_13, %c0_14] : memref<1x128xf32, #tpu.memory_space<vmem>>, vector<1x128xf32>
    %34 = arith.subf %16, %25 : vector<1x128xf32>
    %35 = arith.mulf %32, %34 : vector<1x128xf32>
    %cst_15 = arith.constant 0.000000e+00 : f32
    %36 = vector.broadcast %cst_15 : f32 to vector<1x128xf32>
    %37 = arith.select %8, %35, %36 : vector<1x128xi1>, vector<1x128xf32>
    %38 = arith.addf %33, %37 : vector<1x128xf32>
    %c0_16 = arith.constant 0 : index
    %c0_17 = arith.constant 0 : index
    %39 = vector.load %arg7[%c0_16, %c0_17] : memref<1x128xf32, #tpu.memory_space<vmem>>, vector<1x128xf32>
    tpu.vector_store %arg7[%c0_16, %c0_17], %38 {strides = array<i32>} : memref<1x128xf32, #tpu.memory_space<vmem>>, vector<1x128xf32>,
    %c0_18 = arith.constant 0 : index
    %c0_19 = arith.constant 0 : index
    %40 = vector.load %arg8[%c0_18, %c0_19] : memref<1x128xf32, #tpu.memory_space<vmem>>, vector<1x128xf32>
    %41 = arith.addf %40, %32 : vector<1x128xf32>
    %c0_20 = arith.constant 0 : index
    %c0_21 = arith.constant 0 : index
    %42 = vector.load %arg8[%c0_20, %c0_21] : memref<1x128xf32, #tpu.memory_space<vmem>>, vector<1x128xf32>
    tpu.vector_store %arg8[%c0_20, %c0_21], %41 {strides = array<i32>} : memref<1x128xf32, #tpu.memory_space<vmem>>, vector<1x128xf32>,
    %c1_i32 = arith.constant 1 : i32
    %43 = arith.cmpi eq, %arg1, %c1_i32 : i32
    %44 = arith.extui %43 : i1 to i32
    %c0_i32_22 = arith.constant 0 : i32
    %45 = arith.cmpi ne, %44, %c0_i32_22 : i32
    scf.if %45 {
      %c0_23 = arith.constant 0 : index
      %c0_24 = arith.constant 0 : index
      %46 = vector.load %arg7[%c0_23, %c0_24] : memref<1x128xf32, #tpu.memory_space<vmem>>, vector<1x128xf32>
      %cst_25 = arith.constant dense<0.000000e+00> : vector<1xf32>
      %47 = vector.multi_reduction <add>, %46, %cst_25 [1] : vector<1x128xf32> to vector<1xf32>
      %48 = vector.shape_cast %47 : vector<1xf32> to vector<1x1xf32>
      %c0_26 = arith.constant 0 : index
      %c0_27 = arith.constant 0 : index
      %c0_28 = arith.constant 0 : index
      %49 = vector.load %arg5[%c0_26, %c0_27, %c0_28] : memref<1x1x1xf32, #tpu.memory_space<vmem>>, vector<1x1x1xf32>
      %50 = vector.shape_cast %49 : vector<1x1x1xf32> to vector<1x1xf32>
      %51 = vector.shape_cast %48 : vector<1x1xf32> to vector<1x1x1xf32>
      tpu.vector_store %arg5[%c0_26, %c0_27, %c0_28], %51 {strides = array<i32>} : memref<1x1x1xf32, #tpu.memory_space<vmem>>, vector<1x1x1xf32>,
      %c0_29 = arith.constant 0 : index
      %c0_30 = arith.constant 0 : index
      %52 = vector.load %arg8[%c0_29, %c0_30] : memref<1x128xf32, #tpu.memory_space<vmem>>, vector<1x128xf32>
      %cst_31 = arith.constant dense<0.000000e+00> : vector<1xf32>
      %53 = vector.multi_reduction <add>, %52, %cst_31 [1] : vector<1x128xf32> to vector<1xf32>
      %54 = vector.shape_cast %53 : vector<1xf32> to vector<1x1xf32>
      %c0_32 = arith.constant 0 : index
      %c0_33 = arith.constant 0 : index
      %c0_34 = arith.constant 0 : index
      %55 = vector.load %arg6[%c0_32, %c0_33, %c0_34] : memref<1x1x1xf32, #tpu.memory_space<vmem>>, vector<1x1x1xf32>
      %56 = vector.shape_cast %55 : vector<1x1x1xf32> to vector<1x1xf32>
      %57 = vector.shape_cast %54 : vector<1x1xf32> to vector<1x1x1xf32>
      tpu.vector_store %arg6[%c0_32, %c0_33, %c0_34], %57 {strides = array<i32>} : memref<1x1x1xf32, #tpu.memory_space<vmem>>, vector<1x1x1xf32>,
    } else {
    }
    return
  }
  func.func @transform_0(%arg0: i32, %arg1: i32) -> (i32, i32, i32) {
    %c0_i32 = arith.constant 0 : i32
    %c0_i32_0 = arith.constant 0 : i32
    return %arg1, %c0_i32, %arg0 : i32, i32, i32
  }
  func.func @transform_1(%arg0: i32, %arg1: i32) -> (i32, i32, i32) {
    %c0_i32 = arith.constant 0 : i32
    %c0_i32_0 = arith.constant 0 : i32
    return %arg1, %c0_i32, %arg0 : i32, i32, i32
  }
  func.func @transform_2(%arg0: i32, %arg1: i32) -> (i32, i32) {
    %c0_i32 = arith.constant 0 : i32
    %c0_i32_0 = arith.constant 0 : i32
    %c0_i32_1 = arith.constant 0 : i32
    return %c0_i32, %c0_i32_0 : i32, i32
  }
  func.func @transform_3(%arg0: i32, %arg1: i32) -> (i32, i32, i32) {
    %c0_i32 = arith.constant 0 : i32
    %c0_i32_0 = arith.constant 0 : i32
    %c0_i32_1 = arith.constant 0 : i32
    return %arg0, %c0_i32, %c0_i32_0 : i32, i32, i32
  }
  func.func @transform_4(%arg0: i32, %arg1: i32) -> (i32, i32, i32) {
    %c0_i32 = arith.constant 0 : i32
    %c0_i32_0 = arith.constant 0 : i32
    %c0_i32_1 = arith.constant 0 : i32
    return %arg0, %c0_i32, %c0_i32_0 : i32, i32, i32
  }
}

</mosaic_0001>

<llo_original>
// kernel: tpu_custom_call.1
$region0: #{tpu_custom_call.1}
  #allocation0 [shape = 'u32[]', space=smem, size = 0x4, offset = 0x4, fixed_abs, tag = 'smem constant byte address 0x4 - core index']
  #allocation1 [shape = 'u32[72,128]{1,0:T(1,128)}', space=vmem, size = 0x9000, scoped, tag = 'internal scratch']
  #allocation2 [shape = 'f32[1,128]{1,0:T(1,128)}', space=vmem, size = 0x200, scoped, tag = 'scratch operand']
  #allocation3 [shape = 'f32[1,128]{1,0:T(1,128)}', space=vmem, size = 0x200, scoped, tag = 'scratch operand']
  %s0 = inlined_call_operand.hbm [shape: f32[2,4,256], index: 0, kind: input, shape index: {}]
  %s1 = inlined_call_operand.vmem [shape: s32[2,1,256], index: 1, kind: input, shape index: {}]
  %s2 = inlined_call_operand.vmem [shape: f32[4,1], index: 2, kind: input, shape index: {}]
  %s3 = inlined_call_operand.vmem [shape: f32[2,1,1], index: 3, kind: output, shape index: {0}]
  %s4 = inlined_call_operand.vmem [shape: f32[2,1,1], index: 4, kind: output, shape index: {1}]
  %5 = xla_tuple %s3, %s4
  %s6 = sld [smem:[#allocation0]]
  $region65: #{tpu_custom_call.1} parent=0
    _
  %s8 = ssub.s32 1, %s6
  %s9 = scalar_select 0, %s8, %s6
  $region1: #{tpu_custom_call.1} parent=0
    #allocation4 [shape = 'u8[4096]{0}', space=vmem, size = 0x1000, scoped, tag = 'input window, operand 0']
    #allocation5 [shape = 's32[2]{0}', space=sflag, size = 0x8, scoped, tag = 'scoped memory for tpu_custom_call.1']
    %10 = vsyncpa [#allocation5], 0
    %s11 = scalar_lea.sflag [#allocation5], 1
    %12 = vsyncpa %s11, 0
    loop: start=0, step=1, limit=6
    $region2: #{tpu_custom_call.1} parent=1 // loop_pre_header
      _
    $region3: #{tpu_custom_call.1} parent=1 // loop_header
      %s14 = sphi 0, %s18
      %p15 = scmp.ge.s32.totalorder %s14, 6
      %s21 = sphi 0, %s33
      %s22 = sphi 0, %s29
      %s23 = sphi 0, %s21
      %s24 = sphi 0, %s22
      %s25 = sphi 0, %s23
      %s26 = sphi 0, %s24
      %s38 = sphi 0, %s40
      %s41 = sphi 0, %s38
      %s42 = sphi 0, %s41
      %s58 = sphi 0, %s42
      %s66 = sphi 0, %s68
      %s69 = sphi 0, %s66
      %s70 = sphi 0, %s69
      %s86 = sphi 0, %s70
      %s90 = sphi 0, %s90
      %s92 = sphi 0, %s90
      %s93 = sphi 0, %s92
      %s107 = sphi 0, %s93
      %s113 = sphi 0, %s115
      %s116 = sphi 0, %s113
      %s117 = sphi 0, %s116
      %s133 = sphi 0, %s117
      %s139 = sphi 0, %s141
      %s142 = sphi 0, %s139
      %s143 = sphi 0, %s142
      %s159 = sphi 0, %s143
    $region4: #{tpu_custom_call.1} parent=1 // loop_header_branch
      %17 = sbr.rel (%p15) target = $region8
    $region5: #{tpu_custom_call.1} parent=1 // loop_body
      %s19 = ssub.s32 %s14, 1
      %s20 = ssub.s32 %s14, 2
      %s27 = sadd.s32 1, %s22
      %p28 = scmp.ge.s32.totalorder %s27, 2
      %s29 = scalar_select %p28, 0, %s27
      %s30 = sadd.s32 1, %s21
      %s31 = scalar_select %p28, %s30, %s21
      %p32 = scmp.ge.s32.totalorder %s31, 2
      %s33 = scalar_select %p32, 0, %s31
      %s34 = ssub.s32 %s22, %s29
      %s35 = ssub.s32 %s21, %s33
      %s36 = sor.u32 %s34, %s35
      %p37 = scmp.eq.s32.totalorder %s36, 0
      %s39 = sadd.s32 %s38, 1
      %s40 = scalar_select %p37, %s38, %s39
      %p43 = pneg %p37
      %p44 = scmp.eq.s32.totalorder %s14, 3
      %p45 = por %p43, %p44
      %p46 = scmp.ne.s32.totalorder %s38, %s41
      %p47 = scmp.eq.s32.totalorder %s14, 0
      %p48 = por %p46, %p47
      %p49 = scmp.ne.s32.totalorder %s38, %s41
      %p50 = scmp.eq.s32.totalorder %s19, 3
      %p51 = por %p49, %p50
      %p52 = scmp.ne.s32.totalorder %s41, %s42
      %p53 = scmp.eq.s32.totalorder %s19, 0
      %p54 = por %p52, %p53
      %p55 = scmp.ne.s32.totalorder %s41, %s42
      %p56 = scmp.eq.s32.totalorder %s20, 3
      %p57 = por %p55, %p56
      %p59 = scmp.ne.s32.totalorder %s42, %s58
      %p60 = scmp.eq.s32.totalorder %s20, 0
      %p61 = por %p59, %p60
      %s62 = ssub.s32 %s22, %s29
      %s63 = ssub.s32 %s21, %s33
      %s64 = sor.u32 %s62, %s63
      %p65 = scmp.eq.s32.totalorder %s64, 0
      %s67 = sadd.s32 %s66, 1
      %s68 = scalar_select %p65, %s66, %s67
      %p71 = pneg %p65
      %p72 = scmp.eq.s32.totalorder %s14, 3
      %p73 = por %p71, %p72
      %p74 = scmp.ne.s32.totalorder %s66, %s69
      %p75 = scmp.eq.s32.totalorder %s14, 0
      %p76 = por %p74, %p75
      %p77 = scmp.ne.s32.totalorder %s66, %s69
      %p78 = scmp.eq.s32.totalorder %s19, 3
      %p79 = por %p77, %p78
      %p80 = scmp.ne.s32.totalorder %s69, %s70
      %p81 = scmp.eq.s32.totalorder %s19, 0
      %p82 = por %p80, %p81
      %p83 = scmp.ne.s32.totalorder %s69, %s70
      %p84 = scmp.eq.s32.totalorder %s20, 3
      %p85 = por %p83, %p84
      %p87 = scmp.ne.s32.totalorder %s70, %s86
      %p88 = scmp.eq.s32.totalorder %s20, 0
      %p89 = por %p87, %p88
      %s91 = sadd.s32 %s90, 1
      %p94 = scmp.eq.s32.totalorder %s14, 3
      %p95 = scmp.ne.s32.totalorder %s90, %s92
      %p96 = scmp.eq.s32.totalorder %s14, 0
      %p97 = por %p95, %p96
      %p98 = scmp.ne.s32.totalorder %s90, %s92
      %p99 = scmp.eq.s32.totalorder %s19, 3
      %p100 = por %p98, %p99
      %p101 = scmp.ne.s32.totalorder %s92, %s93
      %p102 = scmp.eq.s32.totalorder %s19, 0
      %p103 = por %p101, %p102
      %p104 = scmp.ne.s32.totalorder %s92, %s93
      %p105 = scmp.eq.s32.totalorder %s20, 3
      %p106 = por %p104, %p105
      %p108 = scmp.ne.s32.totalorder %s93, %s107
      %p109 = scmp.eq.s32.totalorder %s20, 0
      %p110 = por %p108, %p109
      %s111 = ssub.s32 %s21, %s33
      %p112 = scmp.eq.s32.totalorder %s111, 0
      %s114 = sadd.s32 %s113, 1
      %s115 = scalar_select %p112, %s113, %s114
      %p118 = pneg %p112
      %p119 = scmp.eq.s32.totalorder %s14, 3
      %p120 = por %p118, %p119
      %p121 = scmp.ne.s32.totalorder %s113, %s116
      %p122 = scmp.eq.s32.totalorder %s14, 0
      %p123 = por %p121, %p122
      %p124 = scmp.ne.s32.totalorder %s113, %s116
      %p125 = scmp.eq.s32.totalorder %s19, 3
      %p126 = por %p124, %p125
      %p127 = scmp.ne.s32.totalorder %s116, %s117
      %p128 = scmp.eq.s32.totalorder %s19, 0
      %p129 = por %p127, %p128
      %p130 = scmp.ne.s32.totalorder %s116, %s117
      %p131 = scmp.eq.s32.totalorder %s20, 3
      %p132 = por %p130, %p131
      %p134 = scmp.ne.s32.totalorder %s117, %s133
      %p135 = scmp.eq.s32.totalorder %s20, 0
      %p136 = por %p134, %p135
      %s137 = ssub.s32 %s21, %s33
      %p138 = scmp.eq.s32.totalorder %s137, 0
      %s140 = sadd.s32 %s139, 1
      %s141 = scalar_select %p138, %s139, %s140
      %p144 = pneg %p138
      %p145 = scmp.eq.s32.totalorder %s14, 3
      %p146 = por %p144, %p145
      %p147 = scmp.ne.s32.totalorder %s139, %s142
      %p148 = scmp.eq.s32.totalorder %s14, 0
      %p149 = por %p147, %p148
      %p150 = scmp.ne.s32.totalorder %s139, %s142
      %p151 = scmp.eq.s32.totalorder %s19, 3
      %p152 = por %p150, %p151
      %p153 = scmp.ne.s32.totalorder %s142, %s143
      %p154 = scmp.eq.s32.totalorder %s19, 0
      %p155 = por %p153, %p154
      %p156 = scmp.ne.s32.totalorder %s142, %s143
      %p157 = scmp.eq.s32.totalorder %s20, 3
      %p158 = por %p156, %p157
      %p160 = scmp.ne.s32.totalorder %s143, %s159
      %p161 = scmp.eq.s32.totalorder %s20, 0
      %p162 = por %p160, %p161
      %p163 = scmp.le.s32.totalorder 1, %s14
      %p164 = scmp.lt.s32.totalorder %s14, 5
      %p165 = pnand %p163, %p164
      %p166 = pneg %p165
      // Predicated region
      $region9: #{tpu_custom_call.1} parent=5 // pred_check
        _
      $region10: #{tpu_custom_call.1} parent=5 // pred_check_branch
        %168 = sbr.rel (%p165) target = $region12
      $region11: #{tpu_custom_call.1} parent=5 // pred_region
        %s169 = ssub.s32 %s14, 1
        // Predicated region
        $region13: #{tpu_custom_call.1} parent=11 // pred_check
          %p170 = pneg %p103
        $region14: #{tpu_custom_call.1} parent=11 // pred_check_branch
          %172 = sbr.rel (%p170) target = $region16
        $region15: #{tpu_custom_call.1} parent=11 // pred_region
          _
        $region16: #{tpu_custom_call.1} parent=11 // pred_fallthru
          _
      $region12: #{tpu_custom_call.1} parent=5 // pred_fallthru
        _
      %p173 = scmp.lt.s32.totalorder %s14, 4
      // Predicated region
      $region17: #{tpu_custom_call.1} parent=5 // pred_check
        %p174 = pneg %p173
      $region18: #{tpu_custom_call.1} parent=5 // pred_check_branch
        %176 = sbr.rel (%p174) target = $region20
      $region19: #{tpu_custom_call.1} parent=5 // pred_region
        // Predicated region
        $region21: #{tpu_custom_call.1} parent=19 // pred_check
          %p177 = pneg %p48
        $region22: #{tpu_custom_call.1} parent=19 // pred_check_branch
          %179 = sbr.rel (%p177) target = $region24
        $region23: #{tpu_custom_call.1} parent=19 // pred_region
          %s180 = sand.u32 %s38, 1
          %s181 = scalar_lea.sflag [#allocation5], %s180
          %s182 = sand.u32 %s38, 1
          %s183 = smul.addr %s182, 4
          %s184 = scalar_lea.vmem [#allocation4], %s183
          %186 = vsyncadd %s181, 0
          %s187 = smul.addr %s22, 2
          %s188 = sadd.s32 %s21, %s187
          %s189 = smul.addr %s188, 4
          %s190 = scalar_lea.hbm %s0, %s189
          %s192 = sshll.u32 %s190, 4
          %s193 = int_to_ptr.hbm [resolvable:$true] %s192
          %s194 = sshll.u32 %s184, 4
          %s195 = int_to_ptr.vmem [resolvable:$true] %s194
          %197 = dma.hbm_to_vmem [thread:$0]  %s193, 64, %s195, %s181
        $region24: #{tpu_custom_call.1} parent=19 // pred_fallthru
          _
        // Predicated region
        $region25: #{tpu_custom_call.1} parent=19 // pred_check
          %p198 = pneg %p76
        $region26: #{tpu_custom_call.1} parent=19 // pred_check_branch
          %200 = sbr.rel (%p198) target = $region28
        $region27: #{tpu_custom_call.1} parent=19 // pred_region
          %p201 = scmp.lt.s32.totalorder %s22, 1
          %s202 = scalar_select %p201, %s22, 1
          %p203 = scmp.lt.s32.totalorder %s21, 1
          %s204 = scalar_select %p203, %s21, 1
          %s205 = smul.addr %s202, 2
          %s206 = sadd.s32 %s204, %s205
          %s207 = scalar_lea.vmem %s1, %s206
        $region28: #{tpu_custom_call.1} parent=19 // pred_fallthru
          _
      $region20: #{tpu_custom_call.1} parent=5 // pred_fallthru
        _
      %p208 = scmp.le.s32.totalorder 1, %s14
      %p209 = scmp.lt.s32.totalorder %s14, 5
      %p210 = pnand %p208, %p209
      %p211 = pneg %p210
      // Predicated region
      $region29: #{tpu_custom_call.1} parent=5 // pred_check
        _
      $region30: #{tpu_custom_call.1} parent=5 // pred_check_branch
        %213 = sbr.rel (%p210) target = $region32
      $region31: #{tpu_custom_call.1} parent=5 // pred_region
        %s214 = ssub.s32 %s14, 1
        %s215 = sand.u32 %s41, 1
        %s216 = scalar_lea.sflag [#allocation5], %s215
        %s217 = sand.u32 %s41, 1
        %s218 = smul.addr %s217, 4
        %s219 = scalar_lea.vmem [#allocation4], %s218
        // Predicated region
        $region33: #{tpu_custom_call.1} parent=31 // pred_check
          %p220 = pneg %p54
        $region34: #{tpu_custom_call.1} parent=31 // pred_check_branch
          %222 = sbr.rel (%p220) target = $region36
        $region35: #{tpu_custom_call.1} parent=31 // pred_region
          %224 = dma.done %s216, 64
        $region36: #{tpu_custom_call.1} parent=31 // pred_fallthru
          _
        %s225 = sand.u32 %s41, 1
        %s226 = scalar_lea.sflag [#allocation5], %s225
        %s227 = sand.u32 %s41, 1
        %s228 = smul.addr %s227, 4
        %s229 = scalar_lea.vmem [#allocation4], %s228
        %p230 = pneg %p54
        %p231 = pneg %p51
        %p232 = scmp.lt.s32.totalorder %s24, 1
        %s233 = scalar_select %p232, %s24, 1
        %p234 = scmp.lt.s32.totalorder %s23, 1
        %s235 = scalar_select %p234, %s23, 1
        %s236 = smul.addr %s233, 2
        %s237 = sadd.s32 %s235, %s236
        %s238 = scalar_lea.vmem %s1, %s237
        %p239 = pneg %p82
        %p240 = pneg %p79
        %p241 = pneg %p103
        %p242 = pneg %p100
        %p243 = pneg %p129
        %p244 = pneg %p126
        %p245 = scmp.lt.s32.totalorder %s23, 1
        %s246 = scalar_select %p245, %s23, 1
        %s247 = scalar_lea.vmem %s3, %s246
        %p248 = pneg %p155
        %p249 = pneg %p152
        %p250 = scmp.lt.s32.totalorder %s23, 1
        %s251 = scalar_select %p250, %s23, 1
        %s252 = scalar_lea.vmem %s4, %s251
        %p253 = scmp.lt.s32.totalorder %s24, 1
        %s254 = scalar_select %p253, %s24, 1
        %p255 = scmp.lt.s32.totalorder %s23, 1
        %s256 = scalar_select %p255, %s23, 1
        %s257 = smul.addr %s254, 2
        %s258 = sadd.s32 %s256, %s257
        %s259 = scalar_lea.vmem %s1, %s258
        %p260 = scmp.lt.s32.totalorder %s23, 1
        %s261 = scalar_select %p260, %s23, 1
        %s262 = scalar_lea.vmem %s3, %s261
        %p263 = scmp.lt.s32.totalorder %s23, 1
        %s264 = scalar_select %p263, %s23, 1
        %s265 = scalar_lea.vmem %s4, %s264
        %p266 = scmp.eq.s32.totalorder %s24, 0
        // Predicated region
        $region37: #{tpu_custom_call.1} parent=31 // pred_check
          %p267 = pneg %p266
        $region38: #{tpu_custom_call.1} parent=31 // pred_check_branch
          %269 = sbr.rel (%p267) target = $region40
        $region39: #{tpu_custom_call.1} parent=31 // pred_region
          %270 = vst [vmem:[#allocation2] sm:$0x1] 0.0
          %271 = vst [vmem:[#allocation3] sm:$0x1] 0.0
        $region40: #{tpu_custom_call.1} parent=31 // pred_fallthru
          _
        %v272 = vld [vmem:[%s219] sm:$0xf]
        %v273 = vld [vmem:[%s259] sm:$0x1]
        %vm274 = vcmp.ne.s32.totalorder %v273, 255
        %vm275 = vcmask 1043456
        %v276 = vsel %vm275, %v272, -inf
        %v277 = vrot.slane %v276, 4
        %v278 = vmax.f32 %v276, %v277
        %v279 = vrot.slane %v278, 2
        %v280 = vmax.f32 %v278, %v279
        %v281 = vrot.slane %v280, 1
        %v282 = vmax.f32 %v280, %v281
        %v283 = vsub.f32 %v272, %v282
        %v284 = vmul.f32 %v283, 1.442695
        %v285 = vpow.pop %v284
        %v286 = vsel %vm275, %v285, 0.0
        %v287 = vrot.slane %v286, 4
        %v288 = vadd.f32 %v286, %v287
        %v289 = vrot.slane %v288, 2
        %v290 = vadd.f32 %v288, %v289
        %v291 = vrot.slane %v290, 1
        %v292 = vadd.f32 %v290, %v291
        %v293 = vlog2.pop %v292
        %v294 = vmul.f32 %v293, 0.6931472
        %v295 = vlaneseq
        %v296 = vshrl.u32 %v295, 7
        %v297 = vperm.slane %v273, 0
        %vm298 = vcmp.eq.s32.totalorder %v296, %v297
        %v299 = vsel %vm274, 1, 0
        %v300 = vperm.slane %v299, 0
        %vm301 = vcmp.eq.s32.totalorder %v300, 1
        %vm302 = vmand %vm298, %vm301
        %v303 = vsel %vm302, %v283, 0.0
        %v304 = vsel %vm275, %v303, 0.0
        %v305 = vrot.slane %v304, 4
        %v306 = vadd.f32 %v304, %v305
        %v307 = vrot.slane %v306, 2
        %v308 = vadd.f32 %v306, %v307
        %v309 = vrot.slane %v308, 1
        %v310 = vadd.f32 %v308, %v309
        %v311 = vld [vmem:[%s2] sm:$0xf]
        %313 = vset.pattern.permute.xlu0 0
        %314 = vperm.xlu0 %313, %v311
        %v315 = vpop.permute.xlu0 %314
        %v317 = vsel %vm302, %v315, 0.0
        %v318 = vsel %vm275, %v317, 0.0
        %v319 = vrot.slane %v318, 4
        %v320 = vadd.f32 %v318, %v319
        %v321 = vrot.slane %v320, 2
        %v322 = vadd.f32 %v320, %v321
        %v323 = vrot.slane %v322, 1
        %v324 = vadd.f32 %v322, %v323
        %v325 = vld [vmem:[#allocation2] sm:$0x1]
        %v326 = vsub.f32 %v294, %v310
        %v327 = vmul.f32 %v324, %v326
        %v328 = vsel %vm274, %v327, 0.0
        %v329 = vadd.f32 %v325, %v328
        %330 = vst [vmem:[#allocation2] sm:$0x1] %v329
        %v331 = vld [vmem:[#allocation3] sm:$0x1]
        %v332 = vadd.f32 %v331, %v324
        %333 = vst [vmem:[#allocation3] sm:$0x1] %v332
        %p334 = scmp.eq.s32.totalorder %s24, 1
        // Predicated region
        $region41: #{tpu_custom_call.1} parent=31 // pred_check
          %p335 = pneg %p334
        $region42: #{tpu_custom_call.1} parent=31 // pred_check_branch
          %337 = sbr.rel (%p335) target = $region44
        $region43: #{tpu_custom_call.1} parent=31 // pred_region
          %v338 = vld [vmem:[#allocation2] sm:$0x1]
          %vm339 = vcmask 1040384
          %v340 = vsel %vm339, %v338, 0.0
          %341 = vadd.xlane.f32.xlu0 %v340
          %v342 = vpop.xlane.xlu0 %341
          %vm343 = vcmask 0
          %344 = vst.msk [vmem:[%s262] sm:$0x1] %vm343, %v342
          %v345 = vld [vmem:[#allocation3] sm:$0x1]
          %v346 = vsel %vm339, %v345, 0.0
          %347 = vadd.xlane.f32.xlu0 %v346
          %v348 = vpop.xlane.xlu0 %347
          %349 = vst.msk [vmem:[%s265] sm:$0x1] %vm343, %v348
        $region44: #{tpu_custom_call.1} parent=31 // pred_fallthru
          _
        %p350 = scmp.lt.s32.totalorder %s23, 1
        %s351 = scalar_select %p350, %s23, 1
        %s352 = scalar_lea.vmem %s3, %s351
        %p353 = scmp.lt.s32.totalorder %s23, 1
        %s354 = scalar_select %p353, %s23, 1
        %s355 = scalar_lea.vmem %s4, %s354
        // Predicated region
        $region45: #{tpu_custom_call.1} parent=31 // pred_check
          %p356 = pneg %p126
        $region46: #{tpu_custom_call.1} parent=31 // pred_check_branch
          %358 = sbr.rel (%p356) target = $region48
        $region47: #{tpu_custom_call.1} parent=31 // pred_region
          _
        $region48: #{tpu_custom_call.1} parent=31 // pred_fallthru
          _
        // Predicated region
        $region49: #{tpu_custom_call.1} parent=31 // pred_check
          %p359 = pneg %p152
        $region50: #{tpu_custom_call.1} parent=31 // pred_check_branch
          %361 = sbr.rel (%p359) target = $region52
        $region51: #{tpu_custom_call.1} parent=31 // pred_region
          _
        $region52: #{tpu_custom_call.1} parent=31 // pred_fallthru
          _
      $region32: #{tpu_custom_call.1} parent=5 // pred_fallthru
        _
      %p362 = scmp.le.s32.totalorder 2, %s14
      // Predicated region
      $region53: #{tpu_custom_call.1} parent=5 // pred_check
        %p363 = pneg %p362
      $region54: #{tpu_custom_call.1} parent=5 // pred_check_branch
        %365 = sbr.rel (%p363) target = $region56
      $region55: #{tpu_custom_call.1} parent=5 // pred_region
        %s366 = ssub.s32 %s14, 2
        // Predicated region
        $region57: #{tpu_custom_call.1} parent=55 // pred_check
          %p367 = pneg %p132
        $region58: #{tpu_custom_call.1} parent=55 // pred_check_branch
          %369 = sbr.rel (%p367) target = $region60
        $region59: #{tpu_custom_call.1} parent=55 // pred_region
          %p370 = scmp.lt.s32.totalorder %s25, 1
          %s371 = scalar_select %p370, %s25, 1
          %s372 = scalar_lea.vmem %s3, %s371
        $region60: #{tpu_custom_call.1} parent=55 // pred_fallthru
          _
        // Predicated region
        $region61: #{tpu_custom_call.1} parent=55 // pred_check
          %p373 = pneg %p158
        $region62: #{tpu_custom_call.1} parent=55 // pred_check_branch
          %375 = sbr.rel (%p373) target = $region64
        $region63: #{tpu_custom_call.1} parent=55 // pred_region
          %p376 = scmp.lt.s32.totalorder %s25, 1
          %s377 = scalar_select %p376, %s25, 1
          %s378 = scalar_lea.vmem %s4, %s377
        $region64: #{tpu_custom_call.1} parent=55 // pred_fallthru
          _
      $region56: #{tpu_custom_call.1} parent=5 // pred_fallthru
        _
    $region6: #{tpu_custom_call.1} parent=1 // loop_footer
      %s18 = sadd.s32 1, %s14
    $region7: #{tpu_custom_call.1} parent=1 // loop_footer_branch
      %13 = sbr.rel target = $region3
    $region8: #{tpu_custom_call.1} parent=1 // loop_exit
      _
    %379 = vsyncpa [#allocation5], 1
    %s380 = scalar_lea.sflag [#allocation5], 1
    %381 = vsyncpa %s380, 1

</llo_original>
